<compile_context>
chip_gen: v7x
topology: tpu7x:2x2x1
jax: 0.10.0
libtpu: 0.0.40
codegen_flags: <defaults>
</compile_context>

<pallas_src>
import functools
import numpy as np
import jax
import jax.numpy as jnp
from jax.experimental import pallas as pl
from jax.experimental.pallas import tpu as pltpu


# ----------------------------------------------------------------------------
# Kernels
# ----------------------------------------------------------------------------
def _directed_kernel(in_deg_ref, out_deg_ref, tables_ref, out_ref, *, max_degree):
    """out[n, :] = T_in[clamp(in_deg[n])] + T_out[clamp(out_deg[n])].

    tables_ref is the stacked [2K, D] table (K = max_degree+1); the gather for
    both degrees is expressed as one fused one-hot matmul on the MXU.
    """
    k = max_degree + 1
    in_d = jnp.clip(in_deg_ref[...], 0, max_degree)            # [tn, 1] int32
    out_d = jnp.clip(out_deg_ref[...], 0, max_degree)          # [tn, 1] int32
    ids = jax.lax.broadcasted_iota(jnp.int32, (1, 2 * k), 1)   # [1, 2K]
    onehot = jnp.where(ids < k,
                       (in_d == ids).astype(jnp.float32),
                       (out_d == (ids - k)).astype(jnp.float32))   # [tn, 2K]
    out_ref[...] = jnp.dot(onehot, tables_ref[...],
                           preferred_element_type=jnp.float32)     # [tn, D]


def _undirected_kernel(deg_ref, table_ref, out_ref, *, max_degree):
    """out[n, :] = T[clamp(deg[n])] via one-hot matmul."""
    k = max_degree + 1
    d = jnp.clip(deg_ref[...], 0, max_degree)                  # [tn, 1] int32
    ids = jax.lax.broadcasted_iota(jnp.int32, (1, k), 1)       # [1, K]
    onehot = (d == ids).astype(jnp.float32)                    # [tn, K]
    out_ref[...] = jnp.dot(onehot, table_ref[...],
                           preferred_element_type=jnp.float32)


# ----------------------------------------------------------------------------
# Wrapper
# ----------------------------------------------------------------------------
def _pick_tile_n(n):
    for t in (1024, 512, 256, 128):
        if n >= t:
            return t
    return 128


def centrality_encoding_pallas(in_degree, out_degree, in_table, out_table,
                               *, max_degree, undirected, tile_n=None):
    n = int(in_degree.shape[0])
    d = int(in_table.shape[1])
    k = max_degree + 1
    if tile_n is None:
        tile_n = _pick_tile_n(n)
    n_pad = ((n + tile_n - 1) // tile_n) * tile_n           # pad nodes to tile

    def pad_deg(deg):
        deg = deg.reshape(n).astype(jnp.int32)
        if n_pad != n:
            deg = jnp.pad(deg, (0, n_pad - n))               # padded rows discarded
        return deg.reshape(n_pad, 1)

    grid = (n_pad // tile_n,)
    deg_spec = pl.BlockSpec((tile_n, 1), lambda i: (i, 0))
    out_spec = pl.BlockSpec((tile_n, d), lambda i: (i, 0))
    in_deg2 = pad_deg(in_degree)

    if undirected:
        kernel = functools.partial(_undirected_kernel, max_degree=max_degree)
        table_spec = pl.BlockSpec((k, d), lambda i: (0, 0))   # VMEM-resident table
        cost = pl.CostEstimate(flops=2 * n_pad * k * d, transcendentals=0,
                               bytes_accessed=n_pad * 4 + k * d * 4 + n_pad * d * 4)
        out = pl.pallas_call(
            kernel,
            out_shape=jax.ShapeDtypeStruct((n_pad, d), jnp.float32),
            grid=grid,
            in_specs=[deg_spec, table_spec],
            out_specs=out_spec,
            compiler_params=pltpu.CompilerParams(dimension_semantics=("parallel",)),
            cost_estimate=cost,
        )(in_deg2, in_table)
    else:
        out_deg2 = pad_deg(out_degree)
        tables = jnp.concatenate([in_table, out_table], axis=0)   # [2K, D] fused table
        kernel = functools.partial(_directed_kernel, max_degree=max_degree)
        table_spec = pl.BlockSpec((2 * k, d), lambda i: (0, 0))   # VMEM-resident table
        cost = pl.CostEstimate(flops=2 * n_pad * 2 * k * d, transcendentals=0,
                               bytes_accessed=2 * n_pad * 4 + 2 * k * d * 4 + n_pad * d * 4)
        out = pl.pallas_call(
            kernel,
            out_shape=jax.ShapeDtypeStruct((n_pad, d), jnp.float32),
            grid=grid,
            in_specs=[deg_spec, deg_spec, table_spec],
            out_specs=out_spec,
            compiler_params=pltpu.CompilerParams(dimension_semantics=("parallel",)),
            cost_estimate=cost,
        )(in_deg2, out_deg2, tables)

    return out[:n] if n_pad != n else out


# ----------------------------------------------------------------------------
# Self-contained test
# ----------------------------------------------------------------------------
if __name__ == "__main__":
    D, MAX_DEG = 128, 8                      # lane-dense embedding dim

    key = jax.random.PRNGKey(0)
    k0, k1, k2, k3 = jax.random.split(key, 4)

    # nn.Embedding-style tables ~ N(0,1); padding_idx=0 row zeroed at init.
    in_table = jax.random.normal(k2, (MAX_DEG + 1, D), jnp.float32).at[0].set(0.0)
    out_table = jax.random.normal(k3, (MAX_DEG + 1, D), jnp.float32).at[0].set(0.0)

    for N in (200, 512):                     # exercises padding path and exact-tile path
        kd0, kd1 = jax.random.split(jax.random.fold_in(key, N), 2)
        # Degrees; some exceed max_degree so the clamp path is exercised.
        in_degree = jax.random.randint(kd0, (N,), 0, MAX_DEG + 4, dtype=jnp.int32)
        out_degree = jax.random.randint(kd1, (N,), 0, MAX_DEG + 4, dtype=jnp.int32)

        # --- directed path: z_in[in_deg] + z_out[out_deg] ---
        out_dir = centrality_encoding_pallas(in_degree, out_degree, in_table, out_table,
                                             max_degree=MAX_DEG, undirected=False)
        out_dir = jax.block_until_ready(out_dir)
        ref_dir = (in_table[jnp.clip(in_degree, 0, MAX_DEG)]
                   + out_table[jnp.clip(out_degree, 0, MAX_DEG)])
        np.testing.assert_allclose(np.asarray(out_dir), np.asarray(ref_dir),
                                   rtol=1e-6, atol=1e-6)

        # --- undirected path: z[in_deg] ---
        out_und = centrality_encoding_pallas(in_degree, out_degree, in_table, None,
                                             max_degree=MAX_DEG, undirected=True)
        out_und = jax.block_until_ready(out_und)
        ref_und = in_table[jnp.clip(in_degree, 0, MAX_DEG)]
        np.testing.assert_allclose(np.asarray(out_und), np.asarray(ref_und),
                                   rtol=1e-6, atol=1e-6)

    print("KERNEL_OK")
</pallas_src>

<mosaic_0001>
module attributes {stable_mosaic.version = 11 : i64} {
  func.func @_directed_kernel(%arg0: i32, %arg1: memref<128x1xi32, #tpu.memory_space<vmem>>, %arg2: memref<128x1xi32, #tpu.memory_space<vmem>>, %arg3: memref<18x128xf32, #tpu.memory_space<vmem>>, %arg4: memref<128x128xf32, #tpu.memory_space<vmem>>) attributes {dimension_semantics = [#tpu.dimension_semantics<parallel>], iteration_bounds = array<i64: 2>, scalar_prefetch = 0 : i64, scratch_operands = 0 : i64, tpu.core_type = #tpu.core_type<tc>, window_params = [{transform_indices = @transform_0, window_bounds = array<i64: 128, 1>}, {transform_indices = @transform_1, window_bounds = array<i64: 128, 1>}, {pipeline_mode = #tpu.pipeline_mode<synchronous>, transform_indices = @transform_2, window_bounds = array<i64: 18, 128>}, {transform_indices = @transform_3, window_bounds = array<i64: 128, 128>}]} {
    %c0 = arith.constant 0 : index
    %c0_0 = arith.constant 0 : index
    %0 = vector.load %arg1[%c0, %c0_0] : memref<128x1xi32, #tpu.memory_space<vmem>>, vector<128x1xi32>
    %c0_i32 = arith.constant 0 : i32
    %c8_i32 = arith.constant 8 : i32
    %1 = vector.broadcast %c0_i32 : i32 to vector<128x1xi32>
    %2 = arith.maxsi %1, %0 : vector<128x1xi32>
    %3 = vector.broadcast %c8_i32 : i32 to vector<128x1xi32>
    %4 = arith.minsi %3, %2 : vector<128x1xi32>
    %c0_1 = arith.constant 0 : index
    %c0_2 = arith.constant 0 : index
    %5 = vector.load %arg2[%c0_1, %c0_2] : memref<128x1xi32, #tpu.memory_space<vmem>>, vector<128x1xi32>
    %c0_i32_3 = arith.constant 0 : i32
    %c8_i32_4 = arith.constant 8 : i32
    %6 = vector.broadcast %c0_i32_3 : i32 to vector<128x1xi32>
    %7 = arith.maxsi %6, %5 : vector<128x1xi32>
    %8 = vector.broadcast %c8_i32_4 : i32 to vector<128x1xi32>
    %9 = arith.minsi %8, %7 : vector<128x1xi32>
    %10 = tpu.iota {dimensions = array<i32: 1>} : vector<1x18xi32>
    %c9_i32 = arith.constant 9 : i32
    %11 = vector.broadcast %c9_i32 : i32 to vector<1x18xi32>
    %12 = arith.cmpi slt, %10, %11 : vector<1x18xi32>
    %13 = vector.broadcast %4 : vector<128x1xi32> to vector<128x18xi32>
    %14 = vector.broadcast %10 : vector<1x18xi32> to vector<128x18xi32>
    %15 = arith.cmpi eq, %13, %14 : vector<128x18xi32>
    %16 = arith.extui %15 : vector<128x18xi1> to vector<128x18xi32>
    %17 = arith.sitofp %16 : vector<128x18xi32> to vector<128x18xf32>
    %c9_i32_5 = arith.constant 9 : i32
    %18 = vector.broadcast %c9_i32_5 : i32 to vector<1x18xi32>
    %19 = arith.subi %10, %18 : vector<1x18xi32>
    %20 = vector.broadcast %9 : vector<128x1xi32> to vector<128x18xi32>
    %21 = vector.broadcast %19 : vector<1x18xi32> to vector<128x18xi32>
    %22 = arith.cmpi eq, %20, %21 : vector<128x18xi32>
    %23 = arith.extui %22 : vector<128x18xi1> to vector<128x18xi32>
    %24 = arith.sitofp %23 : vector<128x18xi32> to vector<128x18xf32>
    %25 = vector.shape_cast %12 : vector<1x18xi1> to vector<1x18xi1>
    %26 = vector.broadcast %25 : vector<1x18xi1> to vector<128x18xi1>
    %27 = arith.select %26, %17, %24 : vector<128x18xi1>, vector<128x18xf32>
    %c0_6 = arith.constant 0 : index
    %c0_7 = arith.constant 0 : index
    %28 = vector.load %arg3[%c0_6, %c0_7] : memref<18x128xf32, #tpu.memory_space<vmem>>, vector<18x128xf32>
    %cst = arith.constant dense<0.000000e+00> : vector<128x128xf32>
    %29 = tpu.matmul %27, %28, %cst {dimension_numbers = #tpu.dot_dimension_numbers<[1], [0], [0], [1], [0, 0, 1, 1], [], []>} : vector<128x18xf32>, vector<18x128xf32>, vector<128x128xf32> -> vector<128x128xf32>
    %c0_8 = arith.constant 0 : index
    %c0_9 = arith.constant 0 : index
    %30 = vector.load %arg4[%c0_8, %c0_9] : memref<128x128xf32, #tpu.memory_space<vmem>>, vector<128x128xf32>
    tpu.vector_store %arg4[%c0_8, %c0_9], %29 {strides = array<i32>} : memref<128x128xf32, #tpu.memory_space<vmem>>, vector<128x128xf32>,
    return
  }
  func.func @transform_0(%arg0: i32) -> (i32, i32) {
    %c0_i32 = arith.constant 0 : i32
    %c0_i32_0 = arith.constant 0 : i32
    return %arg0, %c0_i32 : i32, i32
  }
  func.func @transform_1(%arg0: i32) -> (i32, i32) {
    %c0_i32 = arith.constant 0 : i32
    %c0_i32_0 = arith.constant 0 : i32
    return %arg0, %c0_i32 : i32, i32
  }
  func.func @transform_2(%arg0: i32) -> (i32, i32) {
    %c0_i32 = arith.constant 0 : i32
    %c0_i32_0 = arith.constant 0 : i32
    %c0_i32_1 = arith.constant 0 : i32
    return %c0_i32, %c0_i32_0 : i32, i32
  }
  func.func @transform_3(%arg0: i32) -> (i32, i32) {
    %c0_i32 = arith.constant 0 : i32
    %c0_i32_0 = arith.constant 0 : i32
    return %arg0, %c0_i32 : i32, i32
  }
}

</mosaic_0001>

<llo_original>
// kernel: tpu_custom_call.1
$region0: #{tpu_custom_call.1}
  #allocation0 [shape = 'u32[]', space=smem, size = 0x4, offset = 0x4, fixed_abs, tag = 'smem constant byte address 0x4 - core index']
  #allocation1 [shape = 'u32[144,128]{1,0:T(1,128)}', space=vmem, size = 0x12000, scoped, tag = 'internal scratch']
  %s0 = inlined_call_operand.vmem [shape: s32[256,1], index: 0, kind: input, shape index: {}]
  %s1 = inlined_call_operand.vmem [shape: s32[256,1], index: 1, kind: input, shape index: {}]
  %s2 = inlined_call_operand.vmem [shape: f32[18,128], index: 2, kind: input, shape index: {}]
  %s3 = inlined_call_operand.hbm [shape: f32[256,128], index: 3, kind: output, shape index: {}]
  %s4 = sld [smem:[#allocation0]]
  $region45: #{tpu_custom_call.1} parent=0
    _
  %s6 = ssub.s32 1, %s4
  %s7 = scalar_select 0, %s6, %s4
  $region1: #{tpu_custom_call.1} parent=0
    #allocation2 [shape = 'u8[131072]{0}', space=vmem, size = 0x20000, scoped, tag = 'output window, operand 0']
    #allocation3 [shape = 's32[2]{0}', space=sflag, size = 0x8, scoped, tag = 'scoped memory for tpu_custom_call.1']
    %8 = vsyncpa [#allocation3], 0
    %s9 = scalar_lea.sflag [#allocation3], 1
    %10 = vsyncpa %s9, 0
    loop: start=0, step=1, limit=4
    $region2: #{tpu_custom_call.1} parent=1 // loop_pre_header
      _
    $region3: #{tpu_custom_call.1} parent=1 // loop_header
      %s12 = sphi 0, %s16
      %p13 = scmp.ge.s32.totalorder %s12, 4
      %s22 = sphi 0, %s24
      %s25 = sphi 0, %s22
      %s26 = sphi 0, %s25
      %s42 = sphi 0, %s26
      %s48 = sphi 0, %s50
      %s51 = sphi 0, %s48
      %s52 = sphi 0, %s51
      %s68 = sphi 0, %s52
      %s72 = sphi 0, %s72
      %s74 = sphi 0, %s72
      %s75 = sphi 0, %s74
      %s89 = sphi 0, %s75
      %s95 = sphi 0, %s97
      %s98 = sphi 0, %s95
      %s99 = sphi 0, %s98
      %s115 = sphi 0, %s99
    $region4: #{tpu_custom_call.1} parent=1 // loop_header_branch
      %15 = sbr.rel (%p13) target = $region8
    $region5: #{tpu_custom_call.1} parent=1 // loop_body
      %s17 = ssub.s32 %s12, 1
      %s18 = ssub.s32 %s12, 2
      %s19 = sadd.s32 %s12, 1
      %s20 = ssub.s32 %s12, %s19
      %p21 = scmp.eq.s32.totalorder %s20, 0
      %s23 = sadd.s32 %s22, 1
      %s24 = scalar_select %p21, %s22, %s23
      %p27 = pneg %p21
      %p28 = scmp.eq.s32.totalorder %s12, 1
      %p29 = por %p27, %p28
      %p30 = scmp.ne.s32.totalorder %s22, %s25
      %p31 = scmp.eq.s32.totalorder %s12, 0
      %p32 = por %p30, %p31
      %p33 = scmp.ne.s32.totalorder %s22, %s25
      %p34 = scmp.eq.s32.totalorder %s17, 1
      %p35 = por %p33, %p34
      %p36 = scmp.ne.s32.totalorder %s25, %s26
      %p37 = scmp.eq.s32.totalorder %s17, 0
      %p38 = por %p36, %p37
      %p39 = scmp.ne.s32.totalorder %s25, %s26
      %p40 = scmp.eq.s32.totalorder %s18, 1
      %p41 = por %p39, %p40
      %p43 = scmp.ne.s32.totalorder %s26, %s42
      %p44 = scmp.eq.s32.totalorder %s18, 0
      %p45 = por %p43, %p44
      %s46 = ssub.s32 %s12, %s19
      %p47 = scmp.eq.s32.totalorder %s46, 0
      %s49 = sadd.s32 %s48, 1
      %s50 = scalar_select %p47, %s48, %s49
      %p53 = pneg %p47
      %p54 = scmp.eq.s32.totalorder %s12, 1
      %p55 = por %p53, %p54
      %p56 = scmp.ne.s32.totalorder %s48, %s51
      %p57 = scmp.eq.s32.totalorder %s12, 0
      %p58 = por %p56, %p57
      %p59 = scmp.ne.s32.totalorder %s48, %s51
      %p60 = scmp.eq.s32.totalorder %s17, 1
      %p61 = por %p59, %p60
      %p62 = scmp.ne.s32.totalorder %s51, %s52
      %p63 = scmp.eq.s32.totalorder %s17, 0
      %p64 = por %p62, %p63
      %p65 = scmp.ne.s32.totalorder %s51, %s52
      %p66 = scmp.eq.s32.totalorder %s18, 1
      %p67 = por %p65, %p66
      %p69 = scmp.ne.s32.totalorder %s52, %s68
      %p70 = scmp.eq.s32.totalorder %s18, 0
      %p71 = por %p69, %p70
      %s73 = sadd.s32 %s72, 1
      %p76 = scmp.eq.s32.totalorder %s12, 1
      %p77 = scmp.ne.s32.totalorder %s72, %s74
      %p78 = scmp.eq.s32.totalorder %s12, 0
      %p79 = por %p77, %p78
      %p80 = scmp.ne.s32.totalorder %s72, %s74
      %p81 = scmp.eq.s32.totalorder %s17, 1
      %p82 = por %p80, %p81
      %p83 = scmp.ne.s32.totalorder %s74, %s75
      %p84 = scmp.eq.s32.totalorder %s17, 0
      %p85 = por %p83, %p84
      %p86 = scmp.ne.s32.totalorder %s74, %s75
      %p87 = scmp.eq.s32.totalorder %s18, 1
      %p88 = por %p86, %p87
      %p90 = scmp.ne.s32.totalorder %s75, %s89
      %p91 = scmp.eq.s32.totalorder %s18, 0
      %p92 = por %p90, %p91
      %s93 = ssub.s32 %s12, %s19
      %p94 = scmp.eq.s32.totalorder %s93, 0
      %s96 = sadd.s32 %s95, 1
      %s97 = scalar_select %p94, %s95, %s96
      %p100 = pneg %p94
      %p101 = scmp.eq.s32.totalorder %s12, 1
      %p102 = por %p100, %p101
      %p103 = scmp.ne.s32.totalorder %s95, %s98
      %p104 = scmp.eq.s32.totalorder %s12, 0
      %p105 = por %p103, %p104
      %p106 = scmp.ne.s32.totalorder %s95, %s98
      %p107 = scmp.eq.s32.totalorder %s17, 1
      %p108 = por %p106, %p107
      %p109 = scmp.ne.s32.totalorder %s98, %s99
      %p110 = scmp.eq.s32.totalorder %s17, 0
      %p111 = por %p109, %p110
      %p112 = scmp.ne.s32.totalorder %s98, %s99
      %p113 = scmp.eq.s32.totalorder %s18, 1
      %p114 = por %p112, %p113
      %p116 = scmp.ne.s32.totalorder %s99, %s115
      %p117 = scmp.eq.s32.totalorder %s18, 0
      %p118 = por %p116, %p117
      %p119 = scmp.le.s32.totalorder 1, %s12
      %p120 = scmp.lt.s32.totalorder %s12, 3
      %p121 = pnand %p119, %p120
      %p122 = pneg %p121
      // Predicated region
      $region9: #{tpu_custom_call.1} parent=5 // pred_check
        _
      $region10: #{tpu_custom_call.1} parent=5 // pred_check_branch
        %124 = sbr.rel (%p121) target = $region12
      $region11: #{tpu_custom_call.1} parent=5 // pred_region
        %s125 = ssub.s32 %s12, 1
        // Predicated region
        $region13: #{tpu_custom_call.1} parent=11 // pred_check
          %p126 = pneg %p85
        $region14: #{tpu_custom_call.1} parent=11 // pred_check_branch
          %128 = sbr.rel (%p126) target = $region16
        $region15: #{tpu_custom_call.1} parent=11 // pred_region
          _
        $region16: #{tpu_custom_call.1} parent=11 // pred_fallthru
          _
      $region12: #{tpu_custom_call.1} parent=5 // pred_fallthru
        _
      %p129 = scmp.lt.s32.totalorder %s12, 2
      // Predicated region
      $region17: #{tpu_custom_call.1} parent=5 // pred_check
        %p130 = pneg %p129
      $region18: #{tpu_custom_call.1} parent=5 // pred_check_branch
        %132 = sbr.rel (%p130) target = $region20
      $region19: #{tpu_custom_call.1} parent=5 // pred_region
        // Predicated region
        $region21: #{tpu_custom_call.1} parent=19 // pred_check
          %p133 = pneg %p32
        $region22: #{tpu_custom_call.1} parent=19 // pred_check_branch
          %135 = sbr.rel (%p133) target = $region24
        $region23: #{tpu_custom_call.1} parent=19 // pred_region
          %s136 = smul.u32 16, %s12
          %p137 = scmp.lt.s32.totalorder %s136, 31
          %s138 = scalar_select %p137, %s136, 31
          %s139 = smul.addr %s138, 8
          %s140 = scalar_lea.vmem %s0, %s139
          %s141 = smul.u32 16, %s12
        $region24: #{tpu_custom_call.1} parent=19 // pred_fallthru
          _
        // Predicated region
        $region25: #{tpu_custom_call.1} parent=19 // pred_check
          %p142 = pneg %p58
        $region26: #{tpu_custom_call.1} parent=19 // pred_check_branch
          %144 = sbr.rel (%p142) target = $region28
        $region27: #{tpu_custom_call.1} parent=19 // pred_region
          %s145 = smul.u32 16, %s12
          %p146 = scmp.lt.s32.totalorder %s145, 31
          %s147 = scalar_select %p146, %s145, 31
          %s148 = smul.addr %s147, 8
          %s149 = scalar_lea.vmem %s1, %s148
          %s150 = smul.u32 16, %s12
        $region28: #{tpu_custom_call.1} parent=19 // pred_fallthru
          _
      $region20: #{tpu_custom_call.1} parent=5 // pred_fallthru
        _
      %p151 = scmp.le.s32.totalorder 1, %s12
      %p152 = scmp.lt.s32.totalorder %s12, 3
      %p153 = pnand %p151, %p152
      %p154 = pneg %p153
      // Predicated region
      $region29: #{tpu_custom_call.1} parent=5 // pred_check
        _
      $region30: #{tpu_custom_call.1} parent=5 // pred_check_branch
        %156 = sbr.rel (%p153) target = $region32
      $region31: #{tpu_custom_call.1} parent=5 // pred_region
        %s157 = ssub.s32 %s12, 1
        %s158 = smul.u32 16, %s17
        %p159 = scmp.lt.s32.totalorder %s158, 31
        %s160 = scalar_select %p159, %s158, 31
        %s161 = smul.addr %s160, 8
        %s162 = scalar_lea.vmem %s0, %s161
        %p163 = pneg %p38
        %p164 = pneg %p35
        %s165 = smul.u32 16, %s17
        %p166 = scmp.lt.s32.totalorder %s165, 31
        %s167 = scalar_select %p166, %s165, 31
        %s168 = smul.addr %s167, 8
        %s169 = scalar_lea.vmem %s1, %s168
        %p170 = pneg %p64
        %p171 = pneg %p61
        %p172 = pneg %p85
        %p173 = pneg %p82
        %p174 = pneg %p111
        %p175 = pneg %p108
        %s176 = sand.u32 %s98, 1
        %s177 = scalar_lea.sflag [#allocation3], %s176
        %s178 = sand.u32 %s98, 1
        %s179 = smul.addr %s178, 128
        %s180 = scalar_lea.vmem [#allocation2], %s179
        %s181 = smul.u32 16, %s17
        %p182 = scmp.lt.s32.totalorder %s181, 31
        %s183 = scalar_select %p182, %s181, 31
        %s184 = smul.addr %s183, 8
        %s185 = scalar_lea.vmem %s0, %s184
        %s186 = smul.u32 16, %s17
        %s187 = smul.u32 16, %s17
        %p188 = scmp.lt.s32.totalorder %s187, 31
        %s189 = scalar_select %p188, %s187, 31
        %s190 = smul.addr %s189, 8
        %s191 = scalar_lea.vmem %s1, %s190
        %s192 = smul.u32 16, %s17
        %s193 = smul.u32 16, %s17
        %v194 = vld [vmem:[%s185] sm:$0xff]
        %v195 = vld [vmem:[%s185 + $0x8] sm:$0xff]
        %v196 = vld [vmem:[%s185 + $0x10] sm:$0xff]
        %v197 = vld [vmem:[%s185 + $0x18] sm:$0xff]
        %v198 = vld [vmem:[%s185 + $0x20] sm:$0xff]
        %v199 = vld [vmem:[%s185 + $0x28] sm:$0xff]
        %v200 = vld [vmem:[%s185 + $0x30] sm:$0xff]
        %v201 = vld [vmem:[%s185 + $0x38] sm:$0xff]
        %v202 = vld [vmem:[%s185 + $0x40] sm:$0xff]
        %v203 = vld [vmem:[%s185 + $0x48] sm:$0xff]
        %v204 = vld [vmem:[%s185 + $0x50] sm:$0xff]
        %v205 = vld [vmem:[%s185 + $0x58] sm:$0xff]
        %v206 = vld [vmem:[%s185 + $0x60] sm:$0xff]
        %v207 = vld [vmem:[%s185 + $0x68] sm:$0xff]
        %v208 = vld [vmem:[%s185 + $0x70] sm:$0xff]
        %v209 = vld [vmem:[%s185 + $0x78] sm:$0xff]
        %vm210 = vcmp.gt.s32.totalorder %v194, 0
        %v211 = vsel %vm210, %v194, 0
        %vm212 = vcmp.gt.s32.totalorder %v195, 0
        %v213 = vsel %vm212, %v195, 0
        %vm214 = vcmp.gt.s32.totalorder %v196, 0
        %v215 = vsel %vm214, %v196, 0
        %vm216 = vcmp.gt.s32.totalorder %v197, 0
        %v217 = vsel %vm216, %v197, 0
        %vm218 = vcmp.gt.s32.totalorder %v198, 0
        %v219 = vsel %vm218, %v198, 0
        %vm220 = vcmp.gt.s32.totalorder %v199, 0
        %v221 = vsel %vm220, %v199, 0
        %vm222 = vcmp.gt.s32.totalorder %v200, 0
        %v223 = vsel %vm222, %v200, 0
        %vm224 = vcmp.gt.s32.totalorder %v201, 0
        %v225 = vsel %vm224, %v201, 0
        %vm226 = vcmp.gt.s32.totalorder %v202, 0
        %v227 = vsel %vm226, %v202, 0
        %vm228 = vcmp.gt.s32.totalorder %v203, 0
        %v229 = vsel %vm228, %v203, 0
        %vm230 = vcmp.gt.s32.totalorder %v204, 0
        %v231 = vsel %vm230, %v204, 0
        %vm232 = vcmp.gt.s32.totalorder %v205, 0
        %v233 = vsel %vm232, %v205, 0
        %vm234 = vcmp.gt.s32.totalorder %v206, 0
        %v235 = vsel %vm234, %v206, 0
        %vm236 = vcmp.gt.s32.totalorder %v207, 0
        %v237 = vsel %vm236, %v207, 0
        %vm238 = vcmp.gt.s32.totalorder %v208, 0
        %v239 = vsel %vm238, %v208, 0
        %vm240 = vcmp.gt.s32.totalorder %v209, 0
        %v241 = vsel %vm240, %v209, 0
        %vm242 = vcmp.lt.s32.totalorder %v211, 8
        %v243 = vsel %vm242, %v211, 8
        %vm244 = vcmp.lt.s32.totalorder %v213, 8
        %v245 = vsel %vm244, %v213, 8
        %vm246 = vcmp.lt.s32.totalorder %v215, 8
        %v247 = vsel %vm246, %v215, 8
        %vm248 = vcmp.lt.s32.totalorder %v217, 8
        %v249 = vsel %vm248, %v217, 8
        %vm250 = vcmp.lt.s32.totalorder %v219, 8
        %v251 = vsel %vm250, %v219, 8
        %vm252 = vcmp.lt.s32.totalorder %v221, 8
        %v253 = vsel %vm252, %v221, 8
        %vm254 = vcmp.lt.s32.totalorder %v223, 8
        %v255 = vsel %vm254, %v223, 8
        %vm256 = vcmp.lt.s32.totalorder %v225, 8
        %v257 = vsel %vm256, %v225, 8
        %vm258 = vcmp.lt.s32.totalorder %v227, 8
        %v259 = vsel %vm258, %v227, 8
        %vm260 = vcmp.lt.s32.totalorder %v229, 8
        %v261 = vsel %vm260, %v229, 8
        %vm262 = vcmp.lt.s32.totalorder %v231, 8
        %v263 = vsel %vm262, %v231, 8
        %vm264 = vcmp.lt.s32.totalorder %v233, 8
        %v265 = vsel %vm264, %v233, 8
        %vm266 = vcmp.lt.s32.totalorder %v235, 8
        %v267 = vsel %vm266, %v235, 8
        %vm268 = vcmp.lt.s32.totalorder %v237, 8
        %v269 = vsel %vm268, %v237, 8
        %vm270 = vcmp.lt.s32.totalorder %v239, 8
        %v271 = vsel %vm270, %v239, 8
        %vm272 = vcmp.lt.s32.totalorder %v241, 8
        %v273 = vsel %vm272, %v241, 8
        %v274 = vld [vmem:[%s191] sm:$0xff]
        %v275 = vld [vmem:[%s191 + $0x8] sm:$0xff]
        %v276 = vld [vmem:[%s191 + $0x10] sm:$0xff]
        %v277 = vld [vmem:[%s191 + $0x18] sm:$0xff]
        %v278 = vld [vmem:[%s191 + $0x20] sm:$0xff]
        %v279 = vld [vmem:[%s191 + $0x28] sm:$0xff]
        %v280 = vld [vmem:[%s191 + $0x30] sm:$0xff]
        %v281 = vld [vmem:[%s191 + $0x38] sm:$0xff]
        %v282 = vld [vmem:[%s191 + $0x40] sm:$0xff]
        %v283 = vld [vmem:[%s191 + $0x48] sm:$0xff]
        %v284 = vld [vmem:[%s191 + $0x50] sm:$0xff]
        %v285 = vld [vmem:[%s191 + $0x58] sm:$0xff]
        %v286 = vld [vmem:[%s191 + $0x60] sm:$0xff]
        %v287 = vld [vmem:[%s191 + $0x68] sm:$0xff]
        %v288 = vld [vmem:[%s191 + $0x70] sm:$0xff]
        %v289 = vld [vmem:[%s191 + $0x78] sm:$0xff]
        %vm290 = vcmp.gt.s32.totalorder %v274, 0
        %v291 = vsel %vm290, %v274, 0
        %vm292 = vcmp.gt.s32.totalorder %v275, 0
        %v293 = vsel %vm292, %v275, 0
        %vm294 = vcmp.gt.s32.totalorder %v276, 0
        %v295 = vsel %vm294, %v276, 0
        %vm296 = vcmp.gt.s32.totalorder %v277, 0
        %v297 = vsel %vm296, %v277, 0
        %vm298 = vcmp.gt.s32.totalorder %v278, 0
        %v299 = vsel %vm298, %v278, 0
        %vm300 = vcmp.gt.s32.totalorder %v279, 0
        %v301 = vsel %vm300, %v279, 0
        %vm302 = vcmp.gt.s32.totalorder %v280, 0
        %v303 = vsel %vm302, %v280, 0
        %vm304 = vcmp.gt.s32.totalorder %v281, 0
        %v305 = vsel %vm304, %v281, 0
        %vm306 = vcmp.gt.s32.totalorder %v282, 0
        %v307 = vsel %vm306, %v282, 0
        %vm308 = vcmp.gt.s32.totalorder %v283, 0
        %v309 = vsel %vm308, %v283, 0
        %vm310 = vcmp.gt.s32.totalorder %v284, 0
        %v311 = vsel %vm310, %v284, 0
        %vm312 = vcmp.gt.s32.totalorder %v285, 0
        %v313 = vsel %vm312, %v285, 0
        %vm314 = vcmp.gt.s32.totalorder %v286, 0
        %v315 = vsel %vm314, %v286, 0
        %vm316 = vcmp.gt.s32.totalorder %v287, 0
        %v317 = vsel %vm316, %v287, 0
        %vm318 = vcmp.gt.s32.totalorder %v288, 0
        %v319 = vsel %vm318, %v288, 0
        %vm320 = vcmp.gt.s32.totalorder %v289, 0
        %v321 = vsel %vm320, %v289, 0
        %vm322 = vcmp.lt.s32.totalorder %v291, 8
        %v323 = vsel %vm322, %v291, 8
        %vm324 = vcmp.lt.s32.totalorder %v293, 8
        %v325 = vsel %vm324, %v293, 8
        %vm326 = vcmp.lt.s32.totalorder %v295, 8
        %v327 = vsel %vm326, %v295, 8
        %vm328 = vcmp.lt.s32.totalorder %v297, 8
        %v329 = vsel %vm328, %v297, 8
        %vm330 = vcmp.lt.s32.totalorder %v299, 8
        %v331 = vsel %vm330, %v299, 8
        %vm332 = vcmp.lt.s32.totalorder %v301, 8
        %v333 = vsel %vm332, %v301, 8
        %vm334 = vcmp.lt.s32.totalorder %v303, 8
        %v335 = vsel %vm334, %v303, 8
        %vm336 = vcmp.lt.s32.totalorder %v305, 8
        %v337 = vsel %vm336, %v305, 8
        %vm338 = vcmp.lt.s32.totalorder %v307, 8
        %v339 = vsel %vm338, %v307, 8
        %vm340 = vcmp.lt.s32.totalorder %v309, 8
        %v341 = vsel %vm340, %v309, 8
        %vm342 = vcmp.lt.s32.totalorder %v311, 8
        %v343 = vsel %vm342, %v311, 8
        %vm344 = vcmp.lt.s32.totalorder %v313, 8
        %v345 = vsel %vm344, %v313, 8
        %vm346 = vcmp.lt.s32.totalorder %v315, 8
        %v347 = vsel %vm346, %v315, 8
        %vm348 = vcmp.lt.s32.totalorder %v317, 8
        %v349 = vsel %vm348, %v317, 8
        %vm350 = vcmp.lt.s32.totalorder %v319, 8
        %v351 = vsel %vm350, %v319, 8
        %vm352 = vcmp.lt.s32.totalorder %v321, 8
        %v353 = vsel %vm352, %v321, 8
        %v354 = vlaneseq
        %v355 = vand.u32 %v354, 127
        %vm356 = vcmp.lt.s32.totalorder %v355, 9
        %357 = vset.pattern.permute.xlu0 0
        %358 = vperm.xlu0 %357, %v243
        %v359 = vpop.permute.xlu0 %358
        %360 = vset.pattern.permute.xlu0 0
        %361 = vperm.xlu0 %360, %v245
        %v362 = vpop.permute.xlu0 %361
        %363 = vset.pattern.permute.xlu0 0
        %364 = vperm.xlu0 %363, %v247
        %v365 = vpop.permute.xlu0 %364
        %366 = vset.pattern.permute.xlu0 0
        %367 = vperm.xlu0 %366, %v249
        %v368 = vpop.permute.xlu0 %367
        %369 = vset.pattern.permute.xlu0 0
        %370 = vperm.xlu0 %369, %v251
        %v371 = vpop.permute.xlu0 %370
        %372 = vset.pattern.permute.xlu0 0
        %373 = vperm.xlu0 %372, %v253
        %v374 = vpop.permute.xlu0 %373
        %375 = vset.pattern.permute.xlu0 0
        %376 = vperm.xlu0 %375, %v255
        %v377 = vpop.permute.xlu0 %376
        %378 = vset.pattern.permute.xlu0 0
        %379 = vperm.xlu0 %378, %v257
        %v380 = vpop.permute.xlu0 %379
        %381 = vset.pattern.permute.xlu0 0
        %382 = vperm.xlu0 %381, %v259
        %v383 = vpop.permute.xlu0 %382
        %384 = vset.pattern.permute.xlu0 0
        %385 = vperm.xlu0 %384, %v261
        %v386 = vpop.permute.xlu0 %385
        %387 = vset.pattern.permute.xlu0 0
        %388 = vperm.xlu0 %387, %v263
        %v389 = vpop.permute.xlu0 %388
        %390 = vset.pattern.permute.xlu0 0
        %391 = vperm.xlu0 %390, %v265
        %v392 = vpop.permute.xlu0 %391
        %393 = vset.pattern.permute.xlu0 0
        %394 = vperm.xlu0 %393, %v267
        %v395 = vpop.permute.xlu0 %394
        %396 = vset.pattern.permute.xlu0 0
        %397 = vperm.xlu0 %396, %v269
        %v398 = vpop.permute.xlu0 %397
        %399 = vset.pattern.permute.xlu0 0
        %400 = vperm.xlu0 %399, %v271
        %v401 = vpop.permute.xlu0 %400
        %402 = vset.pattern.permute.xlu0 0
        %403 = vperm.xlu0 %402, %v273
        %v404 = vpop.permute.xlu0 %403
        %vm405 = vcmp.eq.s32.totalorder %v359, %v355
        %vm406 = vcmp.eq.s32.totalorder %v362, %v355
        %vm407 = vcmp.eq.s32.totalorder %v365, %v355
        %vm408 = vcmp.eq.s32.totalorder %v368, %v355
        %vm409 = vcmp.eq.s32.totalorder %v371, %v355
        %vm410 = vcmp.eq.s32.totalorder %v374, %v355
        %vm411 = vcmp.eq.s32.totalorder %v377, %v355
        %vm412 = vcmp.eq.s32.totalorder %v380, %v355
        %vm413 = vcmp.eq.s32.totalorder %v383, %v355
        %vm414 = vcmp.eq.s32.totalorder %v386, %v355
        %vm415 = vcmp.eq.s32.totalorder %v389, %v355
        %vm416 = vcmp.eq.s32.totalorder %v392, %v355
        %vm417 = vcmp.eq.s32.totalorder %v395, %v355
        %vm418 = vcmp.eq.s32.totalorder %v398, %v355
        %vm419 = vcmp.eq.s32.totalorder %v401, %v355
        %vm420 = vcmp.eq.s32.totalorder %v404, %v355
        %v421 = vsel %vm405, 1, 0
        %v422 = vsel %vm406, 1, 0
        %v423 = vsel %vm407, 1, 0
        %v424 = vsel %vm408, 1, 0
        %v425 = vsel %vm409, 1, 0
        %v426 = vsel %vm410, 1, 0
        %v427 = vsel %vm411, 1, 0
        %v428 = vsel %vm412, 1, 0
        %v429 = vsel %vm413, 1, 0
        %v430 = vsel %vm414, 1, 0
        %v431 = vsel %vm415, 1, 0
        %v432 = vsel %vm416, 1, 0
        %v433 = vsel %vm417, 1, 0
        %v434 = vsel %vm418, 1, 0
        %v435 = vsel %vm419, 1, 0
        %v436 = vsel %vm420, 1, 0
        %v437 = vcvt.s32.f32 %v421
        %v438 = vcvt.s32.f32 %v422
        %v439 = vcvt.s32.f32 %v423
        %v440 = vcvt.s32.f32 %v424
        %v441 = vcvt.s32.f32 %v425
        %v442 = vcvt.s32.f32 %v426
        %v443 = vcvt.s32.f32 %v427
        %v444 = vcvt.s32.f32 %v428
        %v445 = vcvt.s32.f32 %v429
        %v446 = vcvt.s32.f32 %v430
        %v447 = vcvt.s32.f32 %v431
        %v448 = vcvt.s32.f32 %v432
        %v449 = vcvt.s32.f32 %v433
        %v450 = vcvt.s32.f32 %v434
        %v451 = vcvt.s32.f32 %v435
        %v452 = vcvt.s32.f32 %v436
        %v453 = vsub.s32 %v355, 9
        %454 = vset.pattern.permute.xlu0 0
        %455 = vperm.xlu0 %454, %v323
        %v456 = vpop.permute.xlu0 %455
        %457 = vset.pattern.permute.xlu0 0
        %458 = vperm.xlu0 %457, %v325
        %v459 = vpop.permute.xlu0 %458
        %460 = vset.pattern.permute.xlu0 0
        %461 = vperm.xlu0 %460, %v327
        %v462 = vpop.permute.xlu0 %461
        %463 = vset.pattern.permute.xlu0 0
        %464 = vperm.xlu0 %463, %v329
        %v465 = vpop.permute.xlu0 %464
        %466 = vset.pattern.permute.xlu0 0
        %467 = vperm.xlu0 %466, %v331
        %v468 = vpop.permute.xlu0 %467
        %469 = vset.pattern.permute.xlu0 0
        %470 = vperm.xlu0 %469, %v333
        %v471 = vpop.permute.xlu0 %470
        %472 = vset.pattern.permute.xlu0 0
        %473 = vperm.xlu0 %472, %v335
        %v474 = vpop.permute.xlu0 %473
        %475 = vset.pattern.permute.xlu0 0
        %476 = vperm.xlu0 %475, %v337
        %v477 = vpop.permute.xlu0 %476
        %478 = vset.pattern.permute.xlu0 0
        %479 = vperm.xlu0 %478, %v339
        %v480 = vpop.permute.xlu0 %479
        %481 = vset.pattern.permute.xlu0 0
        %482 = vperm.xlu0 %481, %v341
        %v483 = vpop.permute.xlu0 %482
        %484 = vset.pattern.permute.xlu0 0
        %485 = vperm.xlu0 %484, %v343
        %v486 = vpop.permute.xlu0 %485
        %487 = vset.pattern.permute.xlu0 0
        %488 = vperm.xlu0 %487, %v345
        %v489 = vpop.permute.xlu0 %488
        %490 = vset.pattern.permute.xlu0 0
        %491 = vperm.xlu0 %490, %v347
        %v492 = vpop.permute.xlu0 %491
        %493 = vset.pattern.permute.xlu0 0
        %494 = vperm.xlu0 %493, %v349
        %v495 = vpop.permute.xlu0 %494
        %496 = vset.pattern.permute.xlu0 0
        %497 = vperm.xlu0 %496, %v351
        %v498 = vpop.permute.xlu0 %497
        %499 = vset.pattern.permute.xlu0 0
        %500 = vperm.xlu0 %499, %v353
        %v501 = vpop.permute.xlu0 %500
        %vm502 = vcmp.eq.s32.totalorder %v456, %v453
        %vm503 = vcmp.eq.s32.totalorder %v459, %v453
        %vm504 = vcmp.eq.s32.totalorder %v462, %v453
        %vm505 = vcmp.eq.s32.totalorder %v465, %v453
        %vm506 = vcmp.eq.s32.totalorder %v468, %v453
        %vm507 = vcmp.eq.s32.totalorder %v471, %v453
        %vm508 = vcmp.eq.s32.totalorder %v474, %v453
        %vm509 = vcmp.eq.s32.totalorder %v477, %v453
        %vm510 = vcmp.eq.s32.totalorder %v480, %v453
        %vm511 = vcmp.eq.s32.totalorder %v483, %v453
        %vm512 = vcmp.eq.s32.totalorder %v486, %v453
        %vm513 = vcmp.eq.s32.totalorder %v489, %v453
        %vm514 = vcmp.eq.s32.totalorder %v492, %v453
        %vm515 = vcmp.eq.s32.totalorder %v495, %v453
        %vm516 = vcmp.eq.s32.totalorder %v498, %v453
        %vm517 = vcmp.eq.s32.totalorder %v501, %v453
        %v518 = vsel %vm502, 1, 0
        %v519 = vsel %vm503, 1, 0
        %v520 = vsel %vm504, 1, 0
        %v521 = vsel %vm505, 1, 0
        %v522 = vsel %vm506, 1, 0
        %v523 = vsel %vm507, 1, 0
        %v524 = vsel %vm508, 1, 0
        %v525 = vsel %vm509, 1, 0
        %v526 = vsel %vm510, 1, 0
        %v527 = vsel %vm511, 1, 0
        %v528 = vsel %vm512, 1, 0
        %v529 = vsel %vm513, 1, 0
        %v530 = vsel %vm514, 1, 0
        %v531 = vsel %vm515, 1, 0
        %v532 = vsel %vm516, 1, 0
        %v533 = vsel %vm517, 1, 0
        %v534 = vcvt.s32.f32 %v518
        %v535 = vcvt.s32.f32 %v519
        %v536 = vcvt.s32.f32 %v520
        %v537 = vcvt.s32.f32 %v521
        %v538 = vcvt.s32.f32 %v522
        %v539 = vcvt.s32.f32 %v523
        %v540 = vcvt.s32.f32 %v524
        %v541 = vcvt.s32.f32 %v525
        %v542 = vcvt.s32.f32 %v526
        %v543 = vcvt.s32.f32 %v527
        %v544 = vcvt.s32.f32 %v528
        %v545 = vcvt.s32.f32 %v529
        %v546 = vcvt.s32.f32 %v530
        %v547 = vcvt.s32.f32 %v531
        %v548 = vcvt.s32.f32 %v532
        %v549 = vcvt.s32.f32 %v533
        %v550 = vsel %vm356, 1, 0
        %vm551 = vcmp.eq.s32.totalorder %v550, 1
        %v552 = vsel %vm551, %v437, %v534
        %v553 = vsel %vm551, %v438, %v535
        %v554 = vsel %vm551, %v439, %v536
        %v555 = vsel %vm551, %v440, %v537
        %v556 = vsel %vm551, %v441, %v538
        %v557 = vsel %vm551, %v442, %v539
        %v558 = vsel %vm551, %v443, %v540
        %v559 = vsel %vm551, %v444, %v541
        %v560 = vsel %vm551, %v445, %v542
        %v561 = vsel %vm551, %v446, %v543
        %v562 = vsel %vm551, %v447, %v544
        %v563 = vsel %vm551, %v448, %v545
        %v564 = vsel %vm551, %v449, %v546
        %v565 = vsel %vm551, %v450, %v547
        %v566 = vsel %vm551, %v451, %v548
        %v567 = vsel %vm551, %v452, %v549
        %v568 = vld [vmem:[%s2] sm:$0xff]
        %v569 = vld [vmem:[%s2 + $0x8] sm:$0xff]
        %v570 = vld [vmem:[%s2 + $0x10] sm:$0x3]
        %vm571 = vcmask 146432
        %v573 = vsel %vm571, %v552, 0
        %v576 = vsel %vm571, %v553, 0
        %v579 = vsel %vm571, %v554, 0
        %v582 = vsel %vm571, %v555, 0
        %v585 = vsel %vm571, %v556, 0
        %v588 = vsel %vm571, %v557, 0
        %v591 = vsel %vm571, %v558, 0
        %v594 = vsel %vm571, %v559, 0
        %v597 = vsel %vm571, %v560, 0
        %v600 = vsel %vm571, %v561, 0
        %v603 = vsel %vm571, %v562, 0
        %v606 = vsel %vm571, %v563, 0
        %v609 = vsel %vm571, %v564, 0
        %v612 = vsel %vm571, %v565, 0
        %v615 = vsel %vm571, %v566, 0
        %v618 = vsel %vm571, %v567, 0
        %vm620 = vcmask 1041408
        %v622 = vsel %vm620, %v570, 0
        %624 = vmatprep.subr.mxu0 0.0
        %625 = vmatpush1.msra.mxu0 %v568
        %626 = vmatprep.subr.mxu0 0.0
        %627 = vmatpush1.msra.mxu0 %v569
        %628 = vmatprep.subr.mxu0 0.0
        %629 = vmatpush1.msra.mxu0 %v622
        %630 = vmatprep.subr.mxu0 0.0
        %631 = vmatpush1.msra.mxu0 0.0
        %632 = vmatprep.subr.mxu0 0.0
        %633 = vmatpush1.msra.mxu0 0.0
        %634 = vmatprep.subr.mxu0 0.0
        %635 = vmatpush1.msra.mxu0 0.0
        %636 = vmatprep.subr.mxu0 0.0
        %637 = vmatpush1.msra.mxu0 0.0
        %638 = vmatprep.subr.mxu0 0.0
        %639 = vmatpush1.msra.mxu0 0.0
        %640 = vmatprep.subr.mxu0 0.0
        %641 = vmatpush1.msra.mxu0 0.0
        %642 = vmatprep.subr.mxu0 0.0
        %643 = vmatpush1.msra.mxu0 0.0
        %644 = vmatprep.subr.mxu0 0.0
        %645 = vmatpush1.msra.mxu0 0.0
        %646 = vmatprep.subr.mxu0 0.0
        %647 = vmatpush1.msra.mxu0 0.0
        %648 = vmatprep.subr.mxu0 0.0
        %649 = vmatpush1.msra.mxu0 0.0
        %650 = vmatprep.subr.mxu0 0.0
        %651 = vmatpush1.msra.mxu0 0.0
        %652 = vmatprep.subr.mxu0 0.0
        %653 = vmatpush1.msra.mxu0 0.0
        %654 = vmatprep.subr.mxu0 0.0
        %655 = vmatpush1.msra.mxu0 0.0
        %656 = vmatprep.subr.mxu0 0.0
        %657 = vmatpush1.msra.mxu0 0.0
        %658 = vmatprep.subr.mxu0 0.0
        %659 = vmatpush1.msra.mxu0 0.0
        %660 = vmatprep.subr.mxu0 0.0
        %661 = vmatpush1.msra.mxu0 0.0
        %662 = vmatprep.subr.mxu0 0.0
        %663 = vmatpush1.msra.mxu0 0.0
        %664 = vmatprep.subr.mxu0 0.0
        %665 = vmatpush1.msra.mxu0 0.0
        %666 = vmatprep.subr.mxu0 0.0
        %667 = vmatpush1.msra.mxu0 0.0
        %668 = vmatprep.subr.mxu0 0.0
        %669 = vmatpush1.msra.mxu0 0.0
        %670 = vmatprep.subr.mxu0 0.0
        %671 = vmatpush1.msra.mxu0 0.0
        %672 = vmatprep.subr.mxu0 0.0
        %673 = vmatpush1.msra.mxu0 0.0
        %674 = vmatprep.subr.mxu0 0.0
        %675 = vmatpush1.msra.mxu0 0.0
        %676 = vmatprep.subr.mxu0 0.0
        %677 = vmatpush1.msra.mxu0 0.0
        %678 = vmatprep.subr.mxu0 0.0
        %679 = vmatpush1.msra.mxu0 0.0
        %680 = vmatprep.subr.mxu0 0.0
        %681 = vmatpush1.msra.mxu0 0.0
        %682 = vmatprep.subr.mxu0 0.0
        %683 = vmatpush1.msra.mxu0 0.0
        %684 = vmatprep.subr.mxu0 0.0
        %685 = vmatpush1.msra.mxu0 0.0
        %686 = vmatprep.subr.mxu0 0.0
        %687 = vmatpush1.msra.mxu0 0.0
        %688 = vmatprep.mubr.f32.mxu0 0.0
        %689 = vmatmul.mubr.f32.gmra.mrb[0].mxu0 %v573
        %v690 = vpop.f32.mrb[0].mxu0
        %v691 = vadd.f32 0.0, %v690
        %v692 = vpop.f32.mrb[0].mxu0
        %693 = vmatprep.mubr.f32.mxu0 0.0
        %694 = vmatmul.mubr.f32.gmra.mrb[0].mxu0 %v576
        %v695 = vpop.f32.mrb[0].mxu0
        %v696 = vadd.f32 0.0, %v695
        %v697 = vpop.f32.mrb[0].mxu0
        %698 = vmatprep.mubr.f32.mxu0 0.0
        %699 = vmatmul.mubr.f32.gmra.mrb[0].mxu0 %v579
        %v700 = vpop.f32.mrb[0].mxu0
        %v701 = vadd.f32 0.0, %v700
        %v702 = vpop.f32.mrb[0].mxu0
        %703 = vmatprep.mubr.f32.mxu0 0.0
        %704 = vmatmul.mubr.f32.gmra.mrb[0].mxu0 %v582
        %v705 = vpop.f32.mrb[0].mxu0
        %v706 = vadd.f32 0.0, %v705
        %v707 = vpop.f32.mrb[0].mxu0
        %708 = vmatprep.mubr.f32.mxu0 0.0
        %709 = vmatmul.mubr.f32.gmra.mrb[0].mxu0 %v585
        %v710 = vpop.f32.mrb[0].mxu0
        %v711 = vadd.f32 0.0, %v710
        %v712 = vpop.f32.mrb[0].mxu0
        %713 = vmatprep.mubr.f32.mxu0 0.0
        %714 = vmatmul.mubr.f32.gmra.mrb[0].mxu0 %v588
        %v715 = vpop.f32.mrb[0].mxu0
        %v716 = vadd.f32 0.0, %v715
        %v717 = vpop.f32.mrb[0].mxu0
        %718 = vmatprep.mubr.f32.mxu0 0.0
        %719 = vmatmul.mubr.f32.gmra.mrb[0].mxu0 %v591
        %v720 = vpop.f32.mrb[0].mxu0
        %v721 = vadd.f32 0.0, %v720
        %v722 = vpop.f32.mrb[0].mxu0
        %723 = vmatprep.mubr.f32.mxu0 0.0
        %724 = vmatmul.mubr.f32.gmra.mrb[0].mxu0 %v594
        %v725 = vpop.f32.mrb[0].mxu0
        %v726 = vadd.f32 0.0, %v725
        %v727 = vpop.f32.mrb[0].mxu0
        %728 = vmatprep.mubr.f32.mxu0 0.0
        %729 = vmatmul.mubr.f32.gmra.mrb[0].mxu0 %v597
        %v730 = vpop.f32.mrb[0].mxu0
        %v731 = vadd.f32 0.0, %v730
        %v732 = vpop.f32.mrb[0].mxu0
        %733 = vmatprep.mubr.f32.mxu0 0.0
        %734 = vmatmul.mubr.f32.gmra.mrb[0].mxu0 %v600
        %v735 = vpop.f32.mrb[0].mxu0
        %v736 = vadd.f32 0.0, %v735
        %v737 = vpop.f32.mrb[0].mxu0
        %738 = vmatprep.mubr.f32.mxu0 0.0
        %739 = vmatmul.mubr.f32.gmra.mrb[0].mxu0 %v603
        %v740 = vpop.f32.mrb[0].mxu0
        %v741 = vadd.f32 0.0, %v740
        %v742 = vpop.f32.mrb[0].mxu0
        %743 = vmatprep.mubr.f32.mxu0 0.0
        %744 = vmatmul.mubr.f32.gmra.mrb[0].mxu0 %v606
        %v745 = vpop.f32.mrb[0].mxu0
        %v746 = vadd.f32 0.0, %v745
        %v747 = vpop.f32.mrb[0].mxu0
        %748 = vmatprep.mubr.f32.mxu0 0.0
        %749 = vmatmul.mubr.f32.gmra.mrb[0].mxu0 %v609
        %v750 = vpop.f32.mrb[0].mxu0
        %v751 = vadd.f32 0.0, %v750
        %v752 = vpop.f32.mrb[0].mxu0
        %753 = vmatprep.mubr.f32.mxu0 0.0
        %754 = vmatmul.mubr.f32.gmra.mrb[0].mxu0 %v612
        %v755 = vpop.f32.mrb[0].mxu0
        %v756 = vadd.f32 0.0, %v755
        %v757 = vpop.f32.mrb[0].mxu0
        %758 = vmatprep.mubr.f32.mxu0 0.0
        %759 = vmatmul.mubr.f32.gmra.mrb[0].mxu0 %v615
        %v760 = vpop.f32.mrb[0].mxu0
        %v761 = vadd.f32 0.0, %v760
        %v762 = vpop.f32.mrb[0].mxu0
        %763 = vmatprep.mubr.f32.mxu0 0.0
        %764 = vmatmul.mubr.f32.gmra.mrb[0].mxu0 %v618
        %v765 = vpop.f32.mrb[0].mxu0
        %v766 = vadd.f32 0.0, %v765
        %v767 = vpop.f32.mrb[0].mxu0
        %768 = vdwg.mxu0
        %769 = vst [vmem:[%s180] sm:$0xff] %v691
        %770 = vst [vmem:[%s180 + $0x8] sm:$0xff] %v696
        %771 = vst [vmem:[%s180 + $0x10] sm:$0xff] %v701
        %772 = vst [vmem:[%s180 + $0x18] sm:$0xff] %v706
        %773 = vst [vmem:[%s180 + $0x20] sm:$0xff] %v711
        %774 = vst [vmem:[%s180 + $0x28] sm:$0xff] %v716
        %775 = vst [vmem:[%s180 + $0x30] sm:$0xff] %v721
        %776 = vst [vmem:[%s180 + $0x38] sm:$0xff] %v726
        %777 = vst [vmem:[%s180 + $0x40] sm:$0xff] %v731
        %778 = vst [vmem:[%s180 + $0x48] sm:$0xff] %v736
        %779 = vst [vmem:[%s180 + $0x50] sm:$0xff] %v741
        %780 = vst [vmem:[%s180 + $0x58] sm:$0xff] %v746
        %781 = vst [vmem:[%s180 + $0x60] sm:$0xff] %v751
        %782 = vst [vmem:[%s180 + $0x68] sm:$0xff] %v756
        %783 = vst [vmem:[%s180 + $0x70] sm:$0xff] %v761
        %784 = vst [vmem:[%s180 + $0x78] sm:$0xff] %v766
        %s785 = sand.u32 %s98, 1
        %s786 = scalar_lea.sflag [#allocation3], %s785
        %s787 = sand.u32 %s98, 1
        %s788 = smul.addr %s787, 128
        %s789 = scalar_lea.vmem [#allocation2], %s788
        // Predicated region
        $region33: #{tpu_custom_call.1} parent=31 // pred_check
          %p790 = pneg %p108
        $region34: #{tpu_custom_call.1} parent=31 // pred_check_branch
          %792 = sbr.rel (%p790) target = $region36
        $region35: #{tpu_custom_call.1} parent=31 // pred_region
          %s793 = smul.u32 16, %s17
          %s795 = ssub.s32 2048, 2048
          %796 = vsyncadd %s786, %s795
          %s797 = smul.addr %s793, 128
          %s798 = scalar_lea.hbm %s3, %s797
          %s799 = sshll.u32 %s789, 4
          %s800 = int_to_ptr.vmem [resolvable:$true] %s799
          %805 = dma.vmem_to_hbm [thread:$0]  %s800, 2048, %s798, %s786, 128, 128, 8
        $region36: #{tpu_custom_call.1} parent=31 // pred_fallthru
          _
      $region32: #{tpu_custom_call.1} parent=5 // pred_fallthru
        _
      %p806 = scmp.le.s32.totalorder 2, %s12
      // Predicated region
      $region37: #{tpu_custom_call.1} parent=5 // pred_check
        %p807 = pneg %p806
      $region38: #{tpu_custom_call.1} parent=5 // pred_check_branch
        %809 = sbr.rel (%p807) target = $region40
      $region39: #{tpu_custom_call.1} parent=5 // pred_region
        %s810 = ssub.s32 %s12, 2
        // Predicated region
        $region41: #{tpu_custom_call.1} parent=39 // pred_check
          %p811 = pneg %p114
        $region42: #{tpu_custom_call.1} parent=39 // pred_check_branch
          %813 = sbr.rel (%p811) target = $region44
        $region43: #{tpu_custom_call.1} parent=39 // pred_region
          %s814 = sand.u32 %s99, 1
          %s815 = scalar_lea.sflag [#allocation3], %s814
          %s816 = sand.u32 %s99, 1
          %s817 = smul.addr %s816, 128
          %s818 = scalar_lea.vmem [#allocation2], %s817
          %819 = dma.done %s815, 2048
        $region44: #{tpu_custom_call.1} parent=39 // pred_fallthru
          _
      $region40: #{tpu_custom_call.1} parent=5 // pred_fallthru
        _
    $region6: #{tpu_custom_call.1} parent=1 // loop_footer
      %s16 = sadd.s32 1, %s12
    $region7: #{tpu_custom_call.1} parent=1 // loop_footer_branch
      %11 = sbr.rel target = $region3
    $region8: #{tpu_custom_call.1} parent=1 // loop_exit
      _
    %820 = vsyncpa [#allocation3], 1
    %s821 = scalar_lea.sflag [#allocation3], 1
    %822 = vsyncpa %s821, 1

</llo_original>
